<compile_context>
chip_gen: v7x
topology: tpu7x:2x2x1
jax: 0.10.0
libtpu: 0.0.40
codegen_flags: <defaults>
</compile_context>

<pallas_src>
import jax
import jax.numpy as jnp
from jax import lax
from jax.experimental import pallas as pl
from jax.experimental.pallas import tpu as pltpu

DIM_EMBEDDING = 100
LSTM_HIDDEN = 50

# Lane-aligned padded sizes used inside the kernel.  Do NOT pad beyond 128: with D=100/H=50 the
# contraction/output dims inherently use half of a 256-wide MXU; rows (batch tile) are the lever.
D_PAD = 128      # embedding dim 100 -> 128
H_PAD = 128      # hidden dim 50 -> 128

# Tiling caps.  B_TILE cap keeps the f32 loop carry small (<= 8 vregs) and, together with the
# time-chunk axis, keeps per-step VMEM well under v7x's 64 MiB.  Both are sweepable.
MAX_B_TILE = 64
MAX_T_CHUNK = 64


def _round_up(x, m):
    return (x + m - 1) // m * m


def tagger_rnn_kernel(x_ref, wih_ref, whh_ref, b_ref, wout_ref, bout_ref,
                      out_ref, hs_ref, h_ref):
    """Grid: (batch_tiles [parallel], time_chunks [arbitrary]).

       x_ref:   [Tc, TB, Dp]  bf16   time-major (chunk, batch-tile)
       wih_ref: [Dp, Hp] bf16   whh_ref: [Hp, Hp] bf16
       b_ref:   [1, Hp]  f32    wout_ref:[Hp, Np] bf16   bout_ref: [1, Np] f32
       out_ref: [Tc, TB, Np] bf16
       hs_ref:  VMEM scratch [Tc, TB, Hp] bf16   (per-chunk hidden states)
       h_ref:   VMEM scratch [TB, Hp]     f32    (recurrent carry across time chunks)
    """
    T_CHUNK, TB, Dp = x_ref.shape
    Hp = whh_ref.shape[0]
    Np = wout_ref.shape[1]

    tc = pl.program_id(1)

    # Reset the recurrent state at the start of each batch tile's time sweep.
    @pl.when(tc == 0)
    def _():
        h_ref[...] = jnp.zeros_like(h_ref)

    # Loop-invariant weight loads, hoisted once.
    wih = wih_ref[...]
    whh = whh_ref[...]
    b = b_ref[...]

    # 1) Hoisted input projection: ONE big MXU matmul for every timestep in this chunk.
    x2d = x_ref[...].reshape(T_CHUNK * TB, Dp)                       # bf16 [Tc*TB, Dp]
    proj = jnp.dot(x2d, wih, preferred_element_type=jnp.float32) + b
    hs_ref[...] = proj.reshape(T_CHUNK, TB, Hp).astype(hs_ref.dtype)

    # 2) Serial recurrence: only h @ W_hh + tanh.  f32 carry stays in vregs; bf16 states in VMEM.
    #    Larger TB interleaves many independent rows per step, hiding MXU/EUP latency.
    def step(t, h):
        pre = hs_ref[t].astype(jnp.float32) + jnp.dot(
            h.astype(whh.dtype), whh, preferred_element_type=jnp.float32)
        h_new = jnp.tanh(pre)
        hs_ref[t] = h_new.astype(hs_ref.dtype)
        return h_new

    h = lax.fori_loop(0, T_CHUNK, step, h_ref[...], unroll=min(8, T_CHUNK))
    h_ref[...] = h                                                   # carry to next time chunk

    # 3) Hoisted output Linear: one lane-dense matmul + one contiguous bulk bf16 store.
    scores = jnp.dot(hs_ref[...].reshape(T_CHUNK * TB, Hp), wout_ref[...],
                     preferred_element_type=jnp.float32) + bout_ref[...]
    out_ref[...] = scores.reshape(T_CHUNK, TB, Np).astype(out_ref.dtype)


def init_params(key, nwords, ntags):
    ks = jax.random.split(key, 7)
    scale = 0.1
    params = {
        "embedding": jax.random.normal(ks[0], (nwords, DIM_EMBEDDING), jnp.float32) * scale,
        # PyTorch RNN stores weight_ih [H, D], weight_hh [H, H]; we keep transposed versions so the
        # kernel does x @ W_ih^T as x @ wih.
        "wih": jax.random.normal(ks[1], (DIM_EMBEDDING, LSTM_HIDDEN), jnp.float32) * scale,
        "whh": jax.random.normal(ks[2], (LSTM_HIDDEN, LSTM_HIDDEN), jnp.float32) * scale,
        # NOTE: represents b_ih + b_hh folded into one bias (a weight-import path must fold them).
        "b": jax.random.normal(ks[3], (1, LSTM_HIDDEN), jnp.float32) * scale,
        # Linear: weight [ntags, H] in PyTorch; we keep the [H, ntags] transpose.
        "wout": jax.random.normal(ks[4], (LSTM_HIDDEN, ntags), jnp.float32) * scale,
        "bout": jax.random.normal(ks[5], (1, ntags), jnp.float32) * scale,
    }
    return params


def pack_params(params):
    """One-time packing: pad to lane-aligned sizes, cast matmul operands to bf16.

    Done once at init, NOT per forward pass (removes per-call pad/cast HBM passes).
    """
    ntags = params["wout"].shape[1]
    Np = _round_up(ntags, 128)
    return {
        # Pre-padded bf16 embedding table: the gather emits [B, T, D_PAD] bf16 directly.
        "embedding": jnp.pad(params["embedding"],
                             ((0, 0), (0, D_PAD - DIM_EMBEDDING))).astype(jnp.bfloat16),
        "wih": jnp.pad(params["wih"],
                       ((0, D_PAD - DIM_EMBEDDING), (0, H_PAD - LSTM_HIDDEN))).astype(jnp.bfloat16),
        "whh": jnp.pad(params["whh"],
                       ((0, H_PAD - LSTM_HIDDEN), (0, H_PAD - LSTM_HIDDEN))).astype(jnp.bfloat16),
        "b": jnp.pad(params["b"], ((0, 0), (0, H_PAD - LSTM_HIDDEN))).astype(jnp.float32),
        "wout": jnp.pad(params["wout"],
                        ((0, H_PAD - LSTM_HIDDEN), (0, Np - ntags))).astype(jnp.bfloat16),
        "bout": jnp.pad(params["bout"], ((0, 0), (0, Np - ntags))).astype(jnp.float32),
    }


def tagger_forward(packed, sentences, ntags, *, b_tile=None, t_chunk=None):
    """sentences: int32 [B, T] -> scores float32 [B, T, ntags]."""
    B, T = sentences.shape
    Np = packed["wout"].shape[1]

    # Batch tile: as large as possible (fills MXU rows on the serial recurrence), capped for
    # v7x VMEM / vreg pressure; must stay a multiple of 8 so in-kernel reshapes are layout-free.
    if b_tile is None:
        b_tile = min(_round_up(B, 8), MAX_B_TILE)
    b_tile = _round_up(b_tile, 8)
    # Time chunk: bounds VMEM to O(t_chunk * b_tile) and pipelines long sequences.
    if t_chunk is None:
        t_chunk = min(T, MAX_T_CHUNK)

    Bp = _round_up(B, b_tile)
    Tp = _round_up(T, t_chunk)
    grid = (Bp // b_tile, Tp // t_chunk)
    # NOTE(v7x): with large batches grid[0] >= 2, so ("parallel", ...) shards batch tiles across
    # both TensorCores.  At the tiny demo size there is only one tile (nothing to split).

    # Glue: embedding lookup (data-dependent gather) from the pre-padded bf16 table.
    # word_dropout / rnn_output_dropout are identity in eval mode.
    x = packed["embedding"][sentences]                               # [B, T, Dp] bf16
    x = jnp.transpose(x, (1, 0, 2))                                  # time-major [T, B, Dp]
    x = jnp.pad(x, ((0, Tp - T), (0, Bp - B), (0, 0)))               # [Tp, Bp, Dp]

    # Explicit VMEM budget: x/out double-buffered blocks + scratches + weights, with 2x headroom.
    blk = t_chunk * b_tile
    vmem_bytes = (2 * blk * D_PAD * 2            # x block, bf16, double-buffered
                  + 2 * blk * Np * 2             # out block, bf16, double-buffered
                  + blk * H_PAD * 2              # hs scratch, bf16
                  + b_tile * H_PAD * 4           # h carry, f32
                  + 2 * 2 * (D_PAD * H_PAD + H_PAD * H_PAD + H_PAD * Np)   # weights, bf16
                  + 2 * 4 * (H_PAD + Np))        # biases, f32
    vmem_limit = int(min(max(2 * vmem_bytes, 16 << 20), 64 << 20))   # stay under v7x physical VMEM

    out_tm = pl.pallas_call(
        tagger_rnn_kernel,
        out_shape=jax.ShapeDtypeStruct((Tp, Bp, Np), jnp.bfloat16),
        grid_spec=pltpu.PrefetchScalarGridSpec(
            num_scalar_prefetch=0,
            grid=grid,
            in_specs=[
                pl.BlockSpec((t_chunk, b_tile, D_PAD), lambda i, t: (t, i, 0)),   # x tile
                pl.BlockSpec((D_PAD, H_PAD), lambda i, t: (0, 0)),                # wih (full)
                pl.BlockSpec((H_PAD, H_PAD), lambda i, t: (0, 0)),                # whh (full)
                pl.BlockSpec((1, H_PAD), lambda i, t: (0, 0)),                    # b
                pl.BlockSpec((H_PAD, Np), lambda i, t: (0, 0)),                   # wout (full)
                pl.BlockSpec((1, Np), lambda i, t: (0, 0)),                       # bout
            ],
            out_specs=pl.BlockSpec((t_chunk, b_tile, Np), lambda i, t: (t, i, 0)),
            scratch_shapes=[
                pltpu.VMEM((t_chunk, b_tile, H_PAD), jnp.bfloat16),   # hs (per-chunk states)
                pltpu.VMEM((b_tile, H_PAD), jnp.float32),             # h carry across chunks
            ],
        ),
        compiler_params=pltpu.CompilerParams(
            dimension_semantics=("parallel", "arbitrary"),
            vmem_limit_bytes=vmem_limit),
    )(x, packed["wih"], packed["whh"], packed["b"], packed["wout"], packed["bout"])

    scores = jnp.transpose(out_tm, (1, 0, 2))                        # [Bp, Tp, Np]
    return scores[:B, :T, :ntags].astype(jnp.float32)                # slice padding off


def tagger_forward_ref(params, sentences):
    """Pure-JAX fp32 reference for correctness checking."""
    word_vectors = params["embedding"][sentences]                    # [B, T, D]
    x_tm = jnp.transpose(word_vectors, (1, 0, 2))                    # [T, B, D]
    B = sentences.shape[0]
    h0 = jnp.zeros((B, LSTM_HIDDEN), jnp.float32)

    def step(h, x_t):
        h_new = jnp.tanh(x_t @ params["wih"] + h @ params["whh"] + params["b"])
        return h_new, h_new

    _, hs = lax.scan(step, h0, x_tm)                                 # [T, B, H]
    scores = hs @ params["wout"] + params["bout"]                    # [T, B, ntags]
    return jnp.transpose(scores, (1, 0, 2))


if __name__ == "__main__":
    nwords, ntags = 30, 10

    key = jax.random.PRNGKey(0)
    pkey, dkey1, dkey2 = jax.random.split(key, 3)
    params = init_params(pkey, nwords, ntags)
    packed = pack_params(params)

    # --- Demo-sized run (single grid tile). ---
    B, T = 2, 8
    sentences = jax.random.randint(dkey1, (B, T), 0, nwords, dtype=jnp.int32)
    out = jax.block_until_ready(tagger_forward(packed, sentences, ntags))
    ref = jax.block_until_ready(tagger_forward_ref(params, sentences))
    assert out.shape == (B, T, ntags), out.shape
    max_err = float(jnp.max(jnp.abs(out - ref)))
    # bf16 weights/activations/output with f32 accumulation -> small deviation from fp32 reference.
    assert jnp.allclose(out, ref, atol=3e-2, rtol=3e-2), max_err

    # --- Exercise the multi-(batch-tile, time-chunk) grid path with forced small tiles. ---
    B2, T2 = 18, 20
    sentences2 = jax.random.randint(dkey2, (B2, T2), 0, nwords, dtype=jnp.int32)
    out2 = jax.block_until_ready(tagger_forward(packed, sentences2, ntags, b_tile=8, t_chunk=8))
    ref2 = jax.block_until_ready(tagger_forward_ref(params, sentences2))
    assert out2.shape == (B2, T2, ntags), out2.shape
    max_err2 = float(jnp.max(jnp.abs(out2 - ref2)))
    assert jnp.allclose(out2, ref2, atol=3e-2, rtol=3e-2), max_err2

    print("KERNEL_OK")
</pallas_src>

<mosaic_0001>
module attributes {stable_mosaic.version = 11 : i64} {
  func.func @tagger_rnn_kernel(%arg0: i32, %arg1: i32, %arg2: memref<8x8x128xbf16, #tpu.memory_space<vmem>>, %arg3: memref<128x128xbf16, #tpu.memory_space<vmem>>, %arg4: memref<128x128xbf16, #tpu.memory_space<vmem>>, %arg5: memref<1x128xf32, #tpu.memory_space<vmem>>, %arg6: memref<128x128xbf16, #tpu.memory_space<vmem>>, %arg7: memref<1x128xf32, #tpu.memory_space<vmem>>, %arg8: memref<8x8x128xbf16, #tpu.memory_space<vmem>>, %arg9: memref<8x8x128xbf16, #tpu.memory_space<vmem>>, %arg10: memref<8x128xf32, #tpu.memory_space<vmem>>) attributes {dimension_semantics = [#tpu.dimension_semantics<parallel>, #tpu.dimension_semantics<arbitrary>], iteration_bounds = array<i64: 1, 1>, scalar_prefetch = 0 : i64, scratch_operands = 2 : i64, tpu.core_type = #tpu.core_type<tc>, window_params = [{transform_indices = @transform_0, window_bounds = array<i64: 8, 8, 128>}, {pipeline_mode = #tpu.pipeline_mode<synchronous>, transform_indices = @transform_1, window_bounds = array<i64: 128, 128>}, {pipeline_mode = #tpu.pipeline_mode<synchronous>, transform_indices = @transform_2, window_bounds = array<i64: 128, 128>}, {pipeline_mode = #tpu.pipeline_mode<synchronous>, transform_indices = @transform_3, window_bounds = array<i64: 1, 128>}, {pipeline_mode = #tpu.pipeline_mode<synchronous>, transform_indices = @transform_4, window_bounds = array<i64: 128, 128>}, {pipeline_mode = #tpu.pipeline_mode<synchronous>, transform_indices = @transform_5, window_bounds = array<i64: 1, 128>}, {transform_indices = @transform_6, window_bounds = array<i64: 8, 8, 128>}]} {
    %c0_i32 = arith.constant 0 : i32
    %0 = arith.cmpi eq, %arg1, %c0_i32 : i32
    %1 = arith.extui %0 : i1 to i32
    %c0_i32_0 = arith.constant 0 : i32
    %2 = arith.cmpi ne, %1, %c0_i32_0 : i32
    scf.if %2 {
      %cst_68 = arith.constant 0.000000e+00 : f32
      %130 = vector.broadcast %cst_68 : f32 to vector<8x128xf32>
      %c0_69 = arith.constant 0 : index
      %c0_70 = arith.constant 0 : index
      %131 = vector.load %arg10[%c0_69, %c0_70] : memref<8x128xf32, #tpu.memory_space<vmem>>, vector<8x128xf32>
      tpu.vector_store %arg10[%c0_69, %c0_70], %130 {strides = array<i32>} : memref<8x128xf32, #tpu.memory_space<vmem>>, vector<8x128xf32>,
    } else {
    }
    %c0 = arith.constant 0 : index
    %c0_1 = arith.constant 0 : index
    %3 = vector.load %arg3[%c0, %c0_1] : memref<128x128xbf16, #tpu.memory_space<vmem>>, vector<128x128xbf16>
    %c0_2 = arith.constant 0 : index
    %c0_3 = arith.constant 0 : index
    %4 = vector.load %arg4[%c0_2, %c0_3] : memref<128x128xbf16, #tpu.memory_space<vmem>>, vector<128x128xbf16>
    %c0_4 = arith.constant 0 : index
    %c0_5 = arith.constant 0 : index
    %5 = vector.load %arg5[%c0_4, %c0_5] : memref<1x128xf32, #tpu.memory_space<vmem>>, vector<1x128xf32>
    %c0_6 = arith.constant 0 : index
    %c0_7 = arith.constant 0 : index
    %c0_8 = arith.constant 0 : index
    %6 = vector.load %arg2[%c0_6, %c0_7, %c0_8] : memref<8x8x128xbf16, #tpu.memory_space<vmem>>, vector<8x8x128xbf16>
    %7 = vector.shape_cast %6 : vector<8x8x128xbf16> to vector<64x128xbf16>
    %cst = arith.constant dense<0.000000e+00> : vector<64x128xf32>
    %8 = tpu.matmul %7, %3, %cst {dimension_numbers = #tpu.dot_dimension_numbers<[1], [0], [0], [1], [0, 0, 1, 1], [], []>} : vector<64x128xbf16>, vector<128x128xbf16>, vector<64x128xf32> -> vector<64x128xf32>
    %9 = vector.broadcast %5 : vector<1x128xf32> to vector<64x128xf32>
    %10 = arith.addf %8, %9 : vector<64x128xf32>
    %11 = vector.shape_cast %10 : vector<64x128xf32> to vector<8x8x128xf32>
    %12 = arith.truncf %11 : vector<8x8x128xf32> to vector<8x8x128xbf16>
    %c0_9 = arith.constant 0 : index
    %c0_10 = arith.constant 0 : index
    %c0_11 = arith.constant 0 : index
    %13 = vector.load %arg9[%c0_9, %c0_10, %c0_11] : memref<8x8x128xbf16, #tpu.memory_space<vmem>>, vector<8x8x128xbf16>
    tpu.vector_store %arg9[%c0_9, %c0_10, %c0_11], %12 {strides = array<i32>} : memref<8x8x128xbf16, #tpu.memory_space<vmem>>, vector<8x8x128xbf16>,
    %c0_12 = arith.constant 0 : index
    %c0_13 = arith.constant 0 : index
    %14 = vector.load %arg10[%c0_12, %c0_13] : memref<8x128xf32, #tpu.memory_space<vmem>>, vector<8x128xf32>
    %c0_i32_14 = arith.constant 0 : i32
    %15 = arith.index_cast %c0_i32_14 : i32 to index
    %c0_15 = arith.constant 0 : index
    %c0_16 = arith.constant 0 : index
    %16 = vector.load %arg9[%15, %c0_15, %c0_16] : memref<8x8x128xbf16, #tpu.memory_space<vmem>>, vector<1x8x128xbf16>
    %17 = vector.shape_cast %16 : vector<1x8x128xbf16> to vector<8x128xbf16>
    %18 = arith.extf %17 : vector<8x128xbf16> to vector<8x128xf32>
    %19 = arith.truncf %14 : vector<8x128xf32> to vector<8x128xbf16>
    %cst_17 = arith.constant dense<0.000000e+00> : vector<8x128xf32>
    %20 = tpu.matmul %19, %4, %cst_17 {dimension_numbers = #tpu.dot_dimension_numbers<[1], [0], [0], [1], [0, 0, 1, 1], [], []>} : vector<8x128xbf16>, vector<128x128xbf16>, vector<8x128xf32> -> vector<8x128xf32>
    %21 = arith.addf %18, %20 : vector<8x128xf32>
    %22 = math.tanh %21 : vector<8x128xf32>
    %23 = arith.truncf %22 : vector<8x128xf32> to vector<8x128xbf16>
    %24 = arith.index_cast %c0_i32_14 : i32 to index
    %c0_18 = arith.constant 0 : index
    %c0_19 = arith.constant 0 : index
    %25 = vector.load %arg9[%24, %c0_18, %c0_19] : memref<8x8x128xbf16, #tpu.memory_space<vmem>>, vector<1x8x128xbf16>
    %26 = vector.shape_cast %25 : vector<1x8x128xbf16> to vector<8x128xbf16>
    %27 = vector.shape_cast %23 : vector<8x128xbf16> to vector<1x8x128xbf16>
    tpu.vector_store %arg9[%24, %c0_18, %c0_19], %27 {strides = array<i32>} : memref<8x8x128xbf16, #tpu.memory_space<vmem>>, vector<1x8x128xbf16>,
    %c1_i32 = arith.constant 1 : i32
    %28 = arith.index_cast %c1_i32 : i32 to index
    %c0_20 = arith.constant 0 : index
    %c0_21 = arith.constant 0 : index
    %29 = vector.load %arg9[%28, %c0_20, %c0_21] : memref<8x8x128xbf16, #tpu.memory_space<vmem>>, vector<1x8x128xbf16>
    %30 = vector.shape_cast %29 : vector<1x8x128xbf16> to vector<8x128xbf16>
    %31 = arith.extf %30 : vector<8x128xbf16> to vector<8x128xf32>
    %32 = arith.truncf %22 : vector<8x128xf32> to vector<8x128xbf16>
    %cst_22 = arith.constant dense<0.000000e+00> : vector<8x128xf32>
    %33 = tpu.matmul %32, %4, %cst_22 {dimension_numbers = #tpu.dot_dimension_numbers<[1], [0], [0], [1], [0, 0, 1, 1], [], []>} : vector<8x128xbf16>, vector<128x128xbf16>, vector<8x128xf32> -> vector<8x128xf32>
    %34 = arith.addf %31, %33 : vector<8x128xf32>
    %35 = math.tanh %34 : vector<8x128xf32>
    %36 = arith.truncf %35 : vector<8x128xf32> to vector<8x128xbf16>
    %37 = arith.index_cast %c1_i32 : i32 to index
    %c0_23 = arith.constant 0 : index
    %c0_24 = arith.constant 0 : index
    %38 = vector.load %arg9[%37, %c0_23, %c0_24] : memref<8x8x128xbf16, #tpu.memory_space<vmem>>, vector<1x8x128xbf16>
    %39 = vector.shape_cast %38 : vector<1x8x128xbf16> to vector<8x128xbf16>
    %40 = vector.shape_cast %36 : vector<8x128xbf16> to vector<1x8x128xbf16>
    tpu.vector_store %arg9[%37, %c0_23, %c0_24], %40 {strides = array<i32>} : memref<8x8x128xbf16, #tpu.memory_space<vmem>>, vector<1x8x128xbf16>,
    %c2_i32 = arith.constant 2 : i32
    %41 = arith.index_cast %c2_i32 : i32 to index
    %c0_25 = arith.constant 0 : index
    %c0_26 = arith.constant 0 : index
    %42 = vector.load %arg9[%41, %c0_25, %c0_26] : memref<8x8x128xbf16, #tpu.memory_space<vmem>>, vector<1x8x128xbf16>
    %43 = vector.shape_cast %42 : vector<1x8x128xbf16> to vector<8x128xbf16>
    %44 = arith.extf %43 : vector<8x128xbf16> to vector<8x128xf32>
    %45 = arith.truncf %35 : vector<8x128xf32> to vector<8x128xbf16>
    %cst_27 = arith.constant dense<0.000000e+00> : vector<8x128xf32>
    %46 = tpu.matmul %45, %4, %cst_27 {dimension_numbers = #tpu.dot_dimension_numbers<[1], [0], [0], [1], [0, 0, 1, 1], [], []>} : vector<8x128xbf16>, vector<128x128xbf16>, vector<8x128xf32> -> vector<8x128xf32>
    %47 = arith.addf %44, %46 : vector<8x128xf32>
    %48 = math.tanh %47 : vector<8x128xf32>
    %49 = arith.truncf %48 : vector<8x128xf32> to vector<8x128xbf16>
    %50 = arith.index_cast %c2_i32 : i32 to index
    %c0_28 = arith.constant 0 : index
    %c0_29 = arith.constant 0 : index
    %51 = vector.load %arg9[%50, %c0_28, %c0_29] : memref<8x8x128xbf16, #tpu.memory_space<vmem>>, vector<1x8x128xbf16>
    %52 = vector.shape_cast %51 : vector<1x8x128xbf16> to vector<8x128xbf16>
    %53 = vector.shape_cast %49 : vector<8x128xbf16> to vector<1x8x128xbf16>
    tpu.vector_store %arg9[%50, %c0_28, %c0_29], %53 {strides = array<i32>} : memref<8x8x128xbf16, #tpu.memory_space<vmem>>, vector<1x8x128xbf16>,
    %c3_i32 = arith.constant 3 : i32
    %54 = arith.index_cast %c3_i32 : i32 to index
    %c0_30 = arith.constant 0 : index
    %c0_31 = arith.constant 0 : index
    %55 = vector.load %arg9[%54, %c0_30, %c0_31] : memref<8x8x128xbf16, #tpu.memory_space<vmem>>, vector<1x8x128xbf16>
    %56 = vector.shape_cast %55 : vector<1x8x128xbf16> to vector<8x128xbf16>
    %57 = arith.extf %56 : vector<8x128xbf16> to vector<8x128xf32>
    %58 = arith.truncf %48 : vector<8x128xf32> to vector<8x128xbf16>
    %cst_32 = arith.constant dense<0.000000e+00> : vector<8x128xf32>
    %59 = tpu.matmul %58, %4, %cst_32 {dimension_numbers = #tpu.dot_dimension_numbers<[1], [0], [0], [1], [0, 0, 1, 1], [], []>} : vector<8x128xbf16>, vector<128x128xbf16>, vector<8x128xf32> -> vector<8x128xf32>
    %60 = arith.addf %57, %59 : vector<8x128xf32>
    %61 = math.tanh %60 : vector<8x128xf32>
    %62 = arith.truncf %61 : vector<8x128xf32> to vector<8x128xbf16>
    %63 = arith.index_cast %c3_i32 : i32 to index
    %c0_33 = arith.constant 0 : index
    %c0_34 = arith.constant 0 : index
    %64 = vector.load %arg9[%63, %c0_33, %c0_34] : memref<8x8x128xbf16, #tpu.memory_space<vmem>>, vector<1x8x128xbf16>
    %65 = vector.shape_cast %64 : vector<1x8x128xbf16> to vector<8x128xbf16>
    %66 = vector.shape_cast %62 : vector<8x128xbf16> to vector<1x8x128xbf16>
    tpu.vector_store %arg9[%63, %c0_33, %c0_34], %66 {strides = array<i32>} : memref<8x8x128xbf16, #tpu.memory_space<vmem>>, vector<1x8x128xbf16>,
    %c4_i32 = arith.constant 4 : i32
    %67 = arith.index_cast %c4_i32 : i32 to index
    %c0_35 = arith.constant 0 : index
    %c0_36 = arith.constant 0 : index
    %68 = vector.load %arg9[%67, %c0_35, %c0_36] : memref<8x8x128xbf16, #tpu.memory_space<vmem>>, vector<1x8x128xbf16>
    %69 = vector.shape_cast %68 : vector<1x8x128xbf16> to vector<8x128xbf16>
    %70 = arith.extf %69 : vector<8x128xbf16> to vector<8x128xf32>
    %71 = arith.truncf %61 : vector<8x128xf32> to vector<8x128xbf16>
    %cst_37 = arith.constant dense<0.000000e+00> : vector<8x128xf32>
    %72 = tpu.matmul %71, %4, %cst_37 {dimension_numbers = #tpu.dot_dimension_numbers<[1], [0], [0], [1], [0, 0, 1, 1], [], []>} : vector<8x128xbf16>, vector<128x128xbf16>, vector<8x128xf32> -> vector<8x128xf32>
    %73 = arith.addf %70, %72 : vector<8x128xf32>
    %74 = math.tanh %73 : vector<8x128xf32>
    %75 = arith.truncf %74 : vector<8x128xf32> to vector<8x128xbf16>
    %76 = arith.index_cast %c4_i32 : i32 to index
    %c0_38 = arith.constant 0 : index
    %c0_39 = arith.constant 0 : index
    %77 = vector.load %arg9[%76, %c0_38, %c0_39] : memref<8x8x128xbf16, #tpu.memory_space<vmem>>, vector<1x8x128xbf16>
    %78 = vector.shape_cast %77 : vector<1x8x128xbf16> to vector<8x128xbf16>
    %79 = vector.shape_cast %75 : vector<8x128xbf16> to vector<1x8x128xbf16>
    tpu.vector_store %arg9[%76, %c0_38, %c0_39], %79 {strides = array<i32>} : memref<8x8x128xbf16, #tpu.memory_space<vmem>>, vector<1x8x128xbf16>,
    %c5_i32 = arith.constant 5 : i32
    %80 = arith.index_cast %c5_i32 : i32 to index
    %c0_40 = arith.constant 0 : index
    %c0_41 = arith.constant 0 : index
    %81 = vector.load %arg9[%80, %c0_40, %c0_41] : memref<8x8x128xbf16, #tpu.memory_space<vmem>>, vector<1x8x128xbf16>
    %82 = vector.shape_cast %81 : vector<1x8x128xbf16> to vector<8x128xbf16>
    %83 = arith.extf %82 : vector<8x128xbf16> to vector<8x128xf32>
    %84 = arith.truncf %74 : vector<8x128xf32> to vector<8x128xbf16>
    %cst_42 = arith.constant dense<0.000000e+00> : vector<8x128xf32>
    %85 = tpu.matmul %84, %4, %cst_42 {dimension_numbers = #tpu.dot_dimension_numbers<[1], [0], [0], [1], [0, 0, 1, 1], [], []>} : vector<8x128xbf16>, vector<128x128xbf16>, vector<8x128xf32> -> vector<8x128xf32>
    %86 = arith.addf %83, %85 : vector<8x128xf32>
    %87 = math.tanh %86 : vector<8x128xf32>
    %88 = arith.truncf %87 : vector<8x128xf32> to vector<8x128xbf16>
    %89 = arith.index_cast %c5_i32 : i32 to index
    %c0_43 = arith.constant 0 : index
    %c0_44 = arith.constant 0 : index
    %90 = vector.load %arg9[%89, %c0_43, %c0_44] : memref<8x8x128xbf16, #tpu.memory_space<vmem>>, vector<1x8x128xbf16>
    %91 = vector.shape_cast %90 : vector<1x8x128xbf16> to vector<8x128xbf16>
    %92 = vector.shape_cast %88 : vector<8x128xbf16> to vector<1x8x128xbf16>
    tpu.vector_store %arg9[%89, %c0_43, %c0_44], %92 {strides = array<i32>} : memref<8x8x128xbf16, #tpu.memory_space<vmem>>, vector<1x8x128xbf16>,
    %c6_i32 = arith.constant 6 : i32
    %93 = arith.index_cast %c6_i32 : i32 to index
    %c0_45 = arith.constant 0 : index
    %c0_46 = arith.constant 0 : index
    %94 = vector.load %arg9[%93, %c0_45, %c0_46] : memref<8x8x128xbf16, #tpu.memory_space<vmem>>, vector<1x8x128xbf16>
    %95 = vector.shape_cast %94 : vector<1x8x128xbf16> to vector<8x128xbf16>
    %96 = arith.extf %95 : vector<8x128xbf16> to vector<8x128xf32>
    %97 = arith.truncf %87 : vector<8x128xf32> to vector<8x128xbf16>
    %cst_47 = arith.constant dense<0.000000e+00> : vector<8x128xf32>
    %98 = tpu.matmul %97, %4, %cst_47 {dimension_numbers = #tpu.dot_dimension_numbers<[1], [0], [0], [1], [0, 0, 1, 1], [], []>} : vector<8x128xbf16>, vector<128x128xbf16>, vector<8x128xf32> -> vector<8x128xf32>
    %99 = arith.addf %96, %98 : vector<8x128xf32>
    %100 = math.tanh %99 : vector<8x128xf32>
    %101 = arith.truncf %100 : vector<8x128xf32> to vector<8x128xbf16>
    %102 = arith.index_cast %c6_i32 : i32 to index
    %c0_48 = arith.constant 0 : index
    %c0_49 = arith.constant 0 : index
    %103 = vector.load %arg9[%102, %c0_48, %c0_49] : memref<8x8x128xbf16, #tpu.memory_space<vmem>>, vector<1x8x128xbf16>
    %104 = vector.shape_cast %103 : vector<1x8x128xbf16> to vector<8x128xbf16>
    %105 = vector.shape_cast %101 : vector<8x128xbf16> to vector<1x8x128xbf16>
    tpu.vector_store %arg9[%102, %c0_48, %c0_49], %105 {strides = array<i32>} : memref<8x8x128xbf16, #tpu.memory_space<vmem>>, vector<1x8x128xbf16>,
    %c7_i32 = arith.constant 7 : i32
    %106 = arith.index_cast %c7_i32 : i32 to index
    %c0_50 = arith.constant 0 : index
    %c0_51 = arith.constant 0 : index
    %107 = vector.load %arg9[%106, %c0_50, %c0_51] : memref<8x8x128xbf16, #tpu.memory_space<vmem>>, vector<1x8x128xbf16>
    %108 = vector.shape_cast %107 : vector<1x8x128xbf16> to vector<8x128xbf16>
    %109 = arith.extf %108 : vector<8x128xbf16> to vector<8x128xf32>
    %110 = arith.truncf %100 : vector<8x128xf32> to vector<8x128xbf16>
    %cst_52 = arith.constant dense<0.000000e+00> : vector<8x128xf32>
    %111 = tpu.matmul %110, %4, %cst_52 {dimension_numbers = #tpu.dot_dimension_numbers<[1], [0], [0], [1], [0, 0, 1, 1], [], []>} : vector<8x128xbf16>, vector<128x128xbf16>, vector<8x128xf32> -> vector<8x128xf32>
    %112 = arith.addf %109, %111 : vector<8x128xf32>
    %113 = math.tanh %112 : vector<8x128xf32>
    %114 = arith.truncf %113 : vector<8x128xf32> to vector<8x128xbf16>
    %115 = arith.index_cast %c7_i32 : i32 to index
    %c0_53 = arith.constant 0 : index
    %c0_54 = arith.constant 0 : index
    %116 = vector.load %arg9[%115, %c0_53, %c0_54] : memref<8x8x128xbf16, #tpu.memory_space<vmem>>, vector<1x8x128xbf16>
    %117 = vector.shape_cast %116 : vector<1x8x128xbf16> to vector<8x128xbf16>
    %118 = vector.shape_cast %114 : vector<8x128xbf16> to vector<1x8x128xbf16>
    tpu.vector_store %arg9[%115, %c0_53, %c0_54], %118 {strides = array<i32>} : memref<8x8x128xbf16, #tpu.memory_space<vmem>>, vector<1x8x128xbf16>,
    %c8_i32 = arith.constant 8 : i32
    %c0_55 = arith.constant 0 : index
    %c0_56 = arith.constant 0 : index
    %119 = vector.load %arg10[%c0_55, %c0_56] : memref<8x128xf32, #tpu.memory_space<vmem>>, vector<8x128xf32>
    tpu.vector_store %arg10[%c0_55, %c0_56], %113 {strides = array<i32>} : memref<8x128xf32, #tpu.memory_space<vmem>>, vector<8x128xf32>,
    %c0_57 = arith.constant 0 : index
    %c0_58 = arith.constant 0 : index
    %c0_59 = arith.constant 0 : index
    %120 = vector.load %arg9[%c0_57, %c0_58, %c0_59] : memref<8x8x128xbf16, #tpu.memory_space<vmem>>, vector<8x8x128xbf16>
    %121 = vector.shape_cast %120 : vector<8x8x128xbf16> to vector<64x128xbf16>
    %c0_60 = arith.constant 0 : index
    %c0_61 = arith.constant 0 : index
    %122 = vector.load %arg6[%c0_60, %c0_61] : memref<128x128xbf16, #tpu.memory_space<vmem>>, vector<128x128xbf16>
    %cst_62 = arith.constant dense<0.000000e+00> : vector<64x128xf32>
    %123 = tpu.matmul %121, %122, %cst_62 {dimension_numbers = #tpu.dot_dimension_numbers<[1], [0], [0], [1], [0, 0, 1, 1], [], []>} : vector<64x128xbf16>, vector<128x128xbf16>, vector<64x128xf32> -> vector<64x128xf32>
    %c0_63 = arith.constant 0 : index
    %c0_64 = arith.constant 0 : index
    %124 = vector.load %arg7[%c0_63, %c0_64] : memref<1x128xf32, #tpu.memory_space<vmem>>, vector<1x128xf32>
    %125 = vector.broadcast %124 : vector<1x128xf32> to vector<64x128xf32>
    %126 = arith.addf %123, %125 : vector<64x128xf32>
    %127 = vector.shape_cast %126 : vector<64x128xf32> to vector<8x8x128xf32>
    %128 = arith.truncf %127 : vector<8x8x128xf32> to vector<8x8x128xbf16>
    %c0_65 = arith.constant 0 : index
    %c0_66 = arith.constant 0 : index
    %c0_67 = arith.constant 0 : index
    %129 = vector.load %arg8[%c0_65, %c0_66, %c0_67] : memref<8x8x128xbf16, #tpu.memory_space<vmem>>, vector<8x8x128xbf16>
    tpu.vector_store %arg8[%c0_65, %c0_66, %c0_67], %128 {strides = array<i32>} : memref<8x8x128xbf16, #tpu.memory_space<vmem>>, vector<8x8x128xbf16>,
    return
  }
  func.func @transform_0(%arg0: i32, %arg1: i32) -> (i32, i32, i32) {
    %c0_i32 = arith.constant 0 : i32
    %c0_i32_0 = arith.constant 0 : i32
    return %arg1, %arg0, %c0_i32 : i32, i32, i32
  }
  func.func @transform_1(%arg0: i32, %arg1: i32) -> (i32, i32) {
    %c0_i32 = arith.constant 0 : i32
    %c0_i32_0 = arith.constant 0 : i32
    %c0_i32_1 = arith.constant 0 : i32
    return %c0_i32, %c0_i32_0 : i32, i32
  }
  func.func @transform_2(%arg0: i32, %arg1: i32) -> (i32, i32) {
    %c0_i32 = arith.constant 0 : i32
    %c0_i32_0 = arith.constant 0 : i32
    %c0_i32_1 = arith.constant 0 : i32
    return %c0_i32, %c0_i32_0 : i32, i32
  }
  func.func @transform_3(%arg0: i32, %arg1: i32) -> (i32, i32) {
    %c0_i32 = arith.constant 0 : i32
    %c0_i32_0 = arith.constant 0 : i32
    %c0_i32_1 = arith.constant 0 : i32
    return %c0_i32, %c0_i32_0 : i32, i32
  }
  func.func @transform_4(%arg0: i32, %arg1: i32) -> (i32, i32) {
    %c0_i32 = arith.constant 0 : i32
    %c0_i32_0 = arith.constant 0 : i32
    %c0_i32_1 = arith.constant 0 : i32
    return %c0_i32, %c0_i32_0 : i32, i32
  }
  func.func @transform_5(%arg0: i32, %arg1: i32) -> (i32, i32) {
    %c0_i32 = arith.constant 0 : i32
    %c0_i32_0 = arith.constant 0 : i32
    %c0_i32_1 = arith.constant 0 : i32
    return %c0_i32, %c0_i32_0 : i32, i32
  }
  func.func @transform_6(%arg0: i32, %arg1: i32) -> (i32, i32, i32) {
    %c0_i32 = arith.constant 0 : i32
    %c0_i32_0 = arith.constant 0 : i32
    return %arg1, %arg0, %c0_i32 : i32, i32, i32
  }
}

</mosaic_0001>

<llo_original>
// kernel: tpu_custom_call.1
$region0: #{tpu_custom_call.1}
  #allocation0 [shape = 'u32[]', space=smem, size = 0x4, offset = 0x4, fixed_abs, tag = 'smem constant byte address 0x4 - core index']
  #allocation1 [shape = 'u32[144,128]{1,0:T(1,128)}', space=vmem, size = 0x12000, scoped, tag = 'internal scratch']
  #allocation2 [shape = 'bf16[8,8,128]{2,1,0:T(8,128)(2,1)}', space=vmem, size = 0x4000, scoped, tag = 'scratch operand']
  #allocation3 [shape = 'f32[8,128]{1,0:T(8,128)}', space=vmem, size = 0x1000, scoped, tag = 'scratch operand']
  %s0 = inlined_call_operand.hbm [shape: bf16[8,8,128], index: 0, kind: input, shape index: {}]
  %s1 = inlined_call_operand.hbm [shape: bf16[128,128], index: 1, kind: input, shape index: {}]
  %s2 = inlined_call_operand.hbm [shape: bf16[128,128], index: 2, kind: input, shape index: {}]
  %s3 = inlined_call_operand.vmem [shape: f32[1,128], index: 3, kind: input, shape index: {}]
  %s4 = inlined_call_operand.hbm [shape: bf16[128,128], index: 4, kind: input, shape index: {}]
  %s5 = inlined_call_operand.vmem [shape: f32[1,128], index: 5, kind: input, shape index: {}]
  %s6 = inlined_call_operand.hbm [shape: bf16[8,8,128], index: 6, kind: output, shape index: {}]
  %s7 = sld [smem:[#allocation0]]
  $region54: #{tpu_custom_call.1} parent=0
    _
  %s9 = ssub.s32 1, %s7
  %s10 = scalar_select 0, %s9, %s7
  $region1: #{tpu_custom_call.1} parent=0
    #allocation4 [shape = 'u8[16384]{0}', space=vmem, size = 0x4000, scoped, tag = 'input window, operand 0, single buffered']
    #allocation5 [shape = 's32[1]{0}', space=sflag, size = 0x4, scoped, tag = 'scoped memory for tpu_custom_call.1']
    #allocation6 [shape = 's32[1]{0}', space=sflag, size = 0x4, scoped, tag = 'scoped memory for tpu_custom_call.1']
    #allocation7 [shape = 'u8[32768]{0}', space=vmem, size = 0x8000, scoped, tag = 'input window, operand 1, single buffered']
    #allocation8 [shape = 's32[1]{0}', space=sflag, size = 0x4, scoped, tag = 'scoped memory for tpu_custom_call.1']
    #allocation9 [shape = 'u8[32768]{0}', space=vmem, size = 0x8000, scoped, tag = 'input window, operand 2, single buffered']
    #allocation10 [shape = 'u8[32768]{0}', space=vmem, size = 0x8000, scoped, tag = 'input window, operand 4, single buffered']
    #allocation11 [shape = 's32[1]{0}', space=sflag, size = 0x4, scoped, tag = 'scoped memory for tpu_custom_call.1']
    #allocation12 [shape = 'u8[16384]{0}', space=vmem, size = 0x4000, scoped, tag = 'output window, operand 0, single buffered']
    %11 = vsyncpa [#allocation5], 0
    %12 = vsyncpa [#allocation8], 0
    %13 = vsyncpa [#allocation11], 0
    %14 = vsyncpa [#allocation6], 0
    // Predicated region
    $region2: #{tpu_custom_call.1} parent=1 // pred_check
      _
    $region3: #{tpu_custom_call.1} parent=1 // pred_check_branch
      %16 = sbr.rel (0) target = $region5
    $region4: #{tpu_custom_call.1} parent=1 // pred_region
      %s18 = ssub.s32 512, 512
      %19 = vsyncadd [#allocation5], %s18
      %s20 = sshll.u32 [#allocation4], 4
      %s21 = int_to_ptr.vmem [resolvable:$true] %s20
      %26 = dma.hbm_to_vmem [thread:$0]  %s0, 512, %s21, [#allocation5], 64, 64, 4
    $region5: #{tpu_custom_call.1} parent=1 // pred_fallthru
      _
    // Predicated region
    $region6: #{tpu_custom_call.1} parent=1 // pred_check
      _
    $region7: #{tpu_custom_call.1} parent=1 // pred_check_branch
      %28 = sbr.rel (0) target = $region9
    $region8: #{tpu_custom_call.1} parent=1 // pred_region
      %s30 = ssub.s32 1024, 1024
      %31 = vsyncadd [#allocation8], %s30
      %s32 = sshll.u32 [#allocation7], 4
      %s33 = int_to_ptr.vmem [resolvable:$true] %s32
      %38 = dma.hbm_to_vmem [thread:$0]  %s1, 1024, %s33, [#allocation8], 64, 64, 4
    $region9: #{tpu_custom_call.1} parent=1 // pred_fallthru
      _
    // Predicated region
    $region10: #{tpu_custom_call.1} parent=1 // pred_check
      _
    $region11: #{tpu_custom_call.1} parent=1 // pred_check_branch
      %40 = sbr.rel (0) target = $region13
    $region12: #{tpu_custom_call.1} parent=1 // pred_region
      %s42 = ssub.s32 1024, 1024
      %43 = vsyncadd [#allocation8], %s42
      %s44 = sshll.u32 [#allocation9], 4
      %s45 = int_to_ptr.vmem [resolvable:$true] %s44
      %50 = dma.hbm_to_vmem [thread:$0]  %s2, 1024, %s45, [#allocation8], 64, 64, 4
    $region13: #{tpu_custom_call.1} parent=1 // pred_fallthru
      _
    // Predicated region
    $region14: #{tpu_custom_call.1} parent=1 // pred_check
      _
    $region15: #{tpu_custom_call.1} parent=1 // pred_check_branch
      %52 = sbr.rel (0) target = $region17
    $region16: #{tpu_custom_call.1} parent=1 // pred_region
      _
    $region17: #{tpu_custom_call.1} parent=1 // pred_fallthru
      _
    // Predicated region
    $region18: #{tpu_custom_call.1} parent=1 // pred_check
      _
    $region19: #{tpu_custom_call.1} parent=1 // pred_check_branch
      %54 = sbr.rel (0) target = $region21
    $region20: #{tpu_custom_call.1} parent=1 // pred_region
      %s56 = ssub.s32 1024, 1024
      %57 = vsyncadd [#allocation11], %s56
      %s58 = sshll.u32 [#allocation10], 4
      %s59 = int_to_ptr.vmem [resolvable:$true] %s58
      %64 = dma.hbm_to_vmem [thread:$0]  %s4, 1024, %s59, [#allocation11], 64, 64, 4
    $region21: #{tpu_custom_call.1} parent=1 // pred_fallthru
      _
    // Predicated region
    $region22: #{tpu_custom_call.1} parent=1 // pred_check
      _
    $region23: #{tpu_custom_call.1} parent=1 // pred_check_branch
      %66 = sbr.rel (0) target = $region25
    $region24: #{tpu_custom_call.1} parent=1 // pred_region
      _
    $region25: #{tpu_custom_call.1} parent=1 // pred_fallthru
      _
    // Predicated region
    $region26: #{tpu_custom_call.1} parent=1 // pred_check
      _
    $region27: #{tpu_custom_call.1} parent=1 // pred_check_branch
      %68 = sbr.rel (0) target = $region29
    $region28: #{tpu_custom_call.1} parent=1 // pred_region
      %69 = dma.done [#allocation5], 512
    $region29: #{tpu_custom_call.1} parent=1 // pred_fallthru
      _
    // Predicated region
    $region30: #{tpu_custom_call.1} parent=1 // pred_check
      _
    $region31: #{tpu_custom_call.1} parent=1 // pred_check_branch
      %71 = sbr.rel (0) target = $region33
    $region32: #{tpu_custom_call.1} parent=1 // pred_region
      %72 = dma.done [#allocation8], 1024
    $region33: #{tpu_custom_call.1} parent=1 // pred_fallthru
      _
    // Predicated region
    $region34: #{tpu_custom_call.1} parent=1 // pred_check
      _
    $region35: #{tpu_custom_call.1} parent=1 // pred_check_branch
      %74 = sbr.rel (0) target = $region37
    $region36: #{tpu_custom_call.1} parent=1 // pred_region
      %75 = dma.done [#allocation8], 1024
    $region37: #{tpu_custom_call.1} parent=1 // pred_fallthru
      _
    // Predicated region
    $region38: #{tpu_custom_call.1} parent=1 // pred_check
      _
    $region39: #{tpu_custom_call.1} parent=1 // pred_check_branch
      %77 = sbr.rel (0) target = $region41
    $region40: #{tpu_custom_call.1} parent=1 // pred_region
      %78 = dma.done [#allocation11], 1024
    $region41: #{tpu_custom_call.1} parent=1 // pred_fallthru
      _
    %p80 = scmp.eq.s32.totalorder 0, 0
    // Predicated region
    $region42: #{tpu_custom_call.1} parent=1 // pred_check
      %p81 = pneg %p80
    $region43: #{tpu_custom_call.1} parent=1 // pred_check_branch
      %83 = sbr.rel (%p81) target = $region45
    $region44: #{tpu_custom_call.1} parent=1 // pred_region
      %84 = vst [vmem:[#allocation3] sm:$0xff] 0.0
    $region45: #{tpu_custom_call.1} parent=1 // pred_fallthru
      _
    %v85 = vld [vmem:[#allocation7] sm:$0xf]
    %v86 = vld [vmem:[#allocation7 + $0x4] sm:$0xf]
    %v87 = vld [vmem:[#allocation7 + $0x8] sm:$0xf]
    %v88 = vld [vmem:[#allocation7 + $0xc] sm:$0xf]
    %v89 = vld [vmem:[#allocation7 + $0x10] sm:$0xf]
    %v90 = vld [vmem:[#allocation7 + $0x14] sm:$0xf]
    %v91 = vld [vmem:[#allocation7 + $0x18] sm:$0xf]
    %v92 = vld [vmem:[#allocation7 + $0x1c] sm:$0xf]
    %v93 = vld [vmem:[#allocation7 + $0x20] sm:$0xf]
    %v94 = vld [vmem:[#allocation7 + $0x24] sm:$0xf]
    %v95 = vld [vmem:[#allocation7 + $0x28] sm:$0xf]
    %v96 = vld [vmem:[#allocation7 + $0x2c] sm:$0xf]
    %v97 = vld [vmem:[#allocation7 + $0x30] sm:$0xf]
    %v98 = vld [vmem:[#allocation7 + $0x34] sm:$0xf]
    %v99 = vld [vmem:[#allocation7 + $0x38] sm:$0xf]
    %v100 = vld [vmem:[#allocation7 + $0x3c] sm:$0xf]
    %v101 = vld [vmem:[#allocation9] sm:$0xf]
    %v102 = vld [vmem:[#allocation9 + $0x4] sm:$0xf]
    %v103 = vld [vmem:[#allocation9 + $0x8] sm:$0xf]
    %v104 = vld [vmem:[#allocation9 + $0xc] sm:$0xf]
    %v105 = vld [vmem:[#allocation9 + $0x10] sm:$0xf]
    %v106 = vld [vmem:[#allocation9 + $0x14] sm:$0xf]
    %v107 = vld [vmem:[#allocation9 + $0x18] sm:$0xf]
    %v108 = vld [vmem:[#allocation9 + $0x1c] sm:$0xf]
    %v109 = vld [vmem:[#allocation9 + $0x20] sm:$0xf]
    %v110 = vld [vmem:[#allocation9 + $0x24] sm:$0xf]
    %v111 = vld [vmem:[#allocation9 + $0x28] sm:$0xf]
    %v112 = vld [vmem:[#allocation9 + $0x2c] sm:$0xf]
    %v113 = vld [vmem:[#allocation9 + $0x30] sm:$0xf]
    %v114 = vld [vmem:[#allocation9 + $0x34] sm:$0xf]
    %v115 = vld [vmem:[#allocation9 + $0x38] sm:$0xf]
    %v116 = vld [vmem:[#allocation9 + $0x3c] sm:$0xf]
    %v117 = vld [vmem:[%s3] sm:$0x1]
    %v118 = vld [vmem:[#allocation4] sm:$0xf]
    %v119 = vld [vmem:[#allocation4 + $0x4] sm:$0xf]
    %v120 = vld [vmem:[#allocation4 + $0x8] sm:$0xf]
    %v121 = vld [vmem:[#allocation4 + $0xc] sm:$0xf]
    %v122 = vld [vmem:[#allocation4 + $0x10] sm:$0xf]
    %v123 = vld [vmem:[#allocation4 + $0x14] sm:$0xf]
    %v124 = vld [vmem:[#allocation4 + $0x18] sm:$0xf]
    %v125 = vld [vmem:[#allocation4 + $0x1c] sm:$0xf]
    %v127 = vlaneseq
    %v128 = vshrl.u32 %v127, 7
    %v129 = vsub.s32 0, %v128
    %v130 = vrot.slane %v117, %v129
    %v140 = vunpack.c.l.b16 %v118
    %v141 = vunpack.c.l.b16 %v119
    %v142 = vunpack.c.l.b16 %v120
    %v143 = vunpack.c.l.b16 %v121
    %v144 = vunpack.c.l.b16 %v122
    %v145 = vunpack.c.l.b16 %v123
    %v146 = vunpack.c.l.b16 %v124
    %v147 = vunpack.c.l.b16 %v125
    %v148 = vpack.c.b16 %v141, %v140
    %v149 = vpack.c.b16 %v143, %v142
    %v150 = vpack.c.b16 %v145, %v144
    %v151 = vpack.c.b16 %v147, %v146
    %v172 = vunpack.c.l.b16 %v85
    %v173 = vunpack.c.l.b16 %v86
    %v174 = vunpack.c.l.b16 %v87
    %v175 = vunpack.c.l.b16 %v88
    %v176 = vunpack.c.l.b16 %v89
    %v177 = vunpack.c.l.b16 %v90
    %v178 = vunpack.c.l.b16 %v91
    %v179 = vunpack.c.l.b16 %v92
    %v180 = vunpack.c.l.b16 %v93
    %v181 = vunpack.c.l.b16 %v94
    %v182 = vunpack.c.l.b16 %v95
    %v183 = vunpack.c.l.b16 %v96
    %v184 = vunpack.c.l.b16 %v97
    %v185 = vunpack.c.l.b16 %v98
    %v186 = vunpack.c.l.b16 %v99
    %v187 = vunpack.c.l.b16 %v100
    %v188 = vpack.c.b16 %v173, %v172
    %v189 = vpack.c.b16 %v175, %v174
    %v190 = vpack.c.b16 %v177, %v176
    %v191 = vpack.c.b16 %v179, %v178
    %v192 = vpack.c.b16 %v181, %v180
    %v193 = vpack.c.b16 %v183, %v182
    %v194 = vpack.c.b16 %v185, %v184
    %v195 = vpack.c.b16 %v187, %v186
    %204 = vmatprep.subr.bf16.mxu0 0
    %205 = vmatpush1.bf16.msra.mxu0 %v188
    %206 = vmatprep.subr.bf16.mxu0 0
    %207 = vmatpush1.bf16.msra.mxu0 %v189
    %208 = vmatprep.subr.bf16.mxu0 0
    %209 = vmatpush1.bf16.msra.mxu0 %v190
    %210 = vmatprep.subr.bf16.mxu0 0
    %211 = vmatpush1.bf16.msra.mxu0 %v191
    %212 = vmatprep.subr.bf16.mxu0 0
    %213 = vmatpush1.bf16.msra.mxu0 %v192
    %214 = vmatprep.subr.bf16.mxu0 0
    %215 = vmatpush1.bf16.msra.mxu0 %v193
    %216 = vmatprep.subr.bf16.mxu0 0
    %217 = vmatpush1.bf16.msra.mxu0 %v194
    %218 = vmatprep.subr.bf16.mxu0 0
    %219 = vmatpush1.bf16.msra.mxu0 %v195
    %220 = vmatprep.subr.bf16.mxu0 0
    %221 = vmatpush1.bf16.msra.mxu0 0
    %222 = vmatprep.subr.bf16.mxu0 0
    %223 = vmatpush1.bf16.msra.mxu0 0
    %224 = vmatprep.subr.bf16.mxu0 0
    %225 = vmatpush1.bf16.msra.mxu0 0
    %226 = vmatprep.subr.bf16.mxu0 0
    %227 = vmatpush1.bf16.msra.mxu0 0
    %228 = vmatprep.subr.bf16.mxu0 0
    %229 = vmatpush1.bf16.msra.mxu0 0
    %230 = vmatprep.subr.bf16.mxu0 0
    %231 = vmatpush1.bf16.msra.mxu0 0
    %232 = vmatprep.subr.bf16.mxu0 0
    %233 = vmatpush1.bf16.msra.mxu0 0
    %234 = vmatprep.subr.bf16.mxu0 0
    %235 = vmatpush1.bf16.msra.mxu0 0
    %236 = vmatprep.mubr.bf16.mxu0 0
    %237 = vmatmul.mubr.bf16.gmra.mrb[0].mxu0 %v148
    %v238 = vpop.f32.mrb[0].mxu0
    %v239 = vadd.f32 %v130, %v238
    %v240 = vpop.f32.mrb[0].mxu0
    %v241 = vpop.f32.mrb[0].mxu0
    %v242 = vadd.f32 %v130, %v241
    %v243 = vpop.f32.mrb[0].mxu0
    %244 = vmatprep.mubr.bf16.mxu0 0
    %245 = vmatmul.mubr.bf16.gmra.mrb[0].mxu0 %v149
    %v246 = vpop.f32.mrb[0].mxu0
    %v247 = vadd.f32 %v130, %v246
    %v248 = vpop.f32.mrb[0].mxu0
    %v249 = vpop.f32.mrb[0].mxu0
    %v250 = vadd.f32 %v130, %v249
    %v251 = vpop.f32.mrb[0].mxu0
    %252 = vmatprep.mubr.bf16.mxu0 0
    %253 = vmatmul.mubr.bf16.gmra.mrb[0].mxu0 %v150
    %v254 = vpop.f32.mrb[0].mxu0
    %v255 = vadd.f32 %v130, %v254
    %v256 = vpop.f32.mrb[0].mxu0
    %v257 = vpop.f32.mrb[0].mxu0
    %v258 = vadd.f32 %v130, %v257
    %v259 = vpop.f32.mrb[0].mxu0
    %260 = vmatprep.mubr.bf16.mxu0 0
    %261 = vmatmul.mubr.bf16.gmra.mrb[0].mxu0 %v151
    %v262 = vpop.f32.mrb[0].mxu0
    %v263 = vadd.f32 %v130, %v262
    %v264 = vpop.f32.mrb[0].mxu0
    %v265 = vpop.f32.mrb[0].mxu0
    %v266 = vadd.f32 %v130, %v265
    %v267 = vpop.f32.mrb[0].mxu0
    %268 = vdwg.mxu0
    %v269 = vpack.c.bf16 %v239, %v239
    %v270 = vpack.c.bf16 %v242, %v242
    %v271 = vpack.c.bf16 %v247, %v247
    %v272 = vpack.c.bf16 %v250, %v250
    %v273 = vpack.c.bf16 %v255, %v255
    %v274 = vpack.c.bf16 %v258, %v258
    %v275 = vpack.c.bf16 %v263, %v263
    %v276 = vpack.c.bf16 %v266, %v266
    %277 = vst [vmem:[#allocation2] sm:$0xf] %v269
    %278 = vst [vmem:[#allocation2 + $0x4] sm:$0xf] %v270
    %279 = vst [vmem:[#allocation2 + $0x8] sm:$0xf] %v271
    %280 = vst [vmem:[#allocation2 + $0xc] sm:$0xf] %v272
    %281 = vst [vmem:[#allocation2 + $0x10] sm:$0xf] %v273
    %282 = vst [vmem:[#allocation2 + $0x14] sm:$0xf] %v274
    %283 = vst [vmem:[#allocation2 + $0x18] sm:$0xf] %v275
    %284 = vst [vmem:[#allocation2 + $0x1c] sm:$0xf] %v276
    %v285 = vld [vmem:[#allocation3] sm:$0xff]
    %v286 = vld [vmem:[#allocation2] sm:$0xf]
    %v287 = vunpack.c.l.bf16 %v286
    %v288 = vpack.c.bf16 %v285, %v285
    %v305 = vunpack.c.l.b16 %v101
    %v306 = vunpack.c.l.b16 %v102
    %v307 = vunpack.c.l.b16 %v103
    %v308 = vunpack.c.l.b16 %v104
    %v309 = vunpack.c.l.b16 %v105
    %v310 = vunpack.c.l.b16 %v106
    %v311 = vunpack.c.l.b16 %v107
    %v312 = vunpack.c.l.b16 %v108
    %v313 = vunpack.c.l.b16 %v109
    %v314 = vunpack.c.l.b16 %v110
    %v315 = vunpack.c.l.b16 %v111
    %v316 = vunpack.c.l.b16 %v112
    %v317 = vunpack.c.l.b16 %v113
    %v318 = vunpack.c.l.b16 %v114
    %v319 = vunpack.c.l.b16 %v115
    %v320 = vunpack.c.l.b16 %v116
    %v321 = vpack.c.b16 %v306, %v305
    %v322 = vpack.c.b16 %v308, %v307
    %v323 = vpack.c.b16 %v310, %v309
    %v324 = vpack.c.b16 %v312, %v311
    %v325 = vpack.c.b16 %v314, %v313
    %v326 = vpack.c.b16 %v316, %v315
    %v327 = vpack.c.b16 %v318, %v317
    %v328 = vpack.c.b16 %v320, %v319
    %337 = vmatprep.subr.bf16.mxu0 0
    %338 = vmatpush1.bf16.msra.mxu0 %v321
    %339 = vmatprep.subr.bf16.mxu0 0
    %340 = vmatpush1.bf16.msra.mxu0 %v322
    %341 = vmatprep.subr.bf16.mxu0 0
    %342 = vmatpush1.bf16.msra.mxu0 %v323
    %343 = vmatprep.subr.bf16.mxu0 0
    %344 = vmatpush1.bf16.msra.mxu0 %v324
    %345 = vmatprep.subr.bf16.mxu0 0
    %346 = vmatpush1.bf16.msra.mxu0 %v325
    %347 = vmatprep.subr.bf16.mxu0 0
    %348 = vmatpush1.bf16.msra.mxu0 %v326
    %349 = vmatprep.subr.bf16.mxu0 0
    %350 = vmatpush1.bf16.msra.mxu0 %v327
    %351 = vmatprep.subr.bf16.mxu0 0
    %352 = vmatpush1.bf16.msra.mxu0 %v328
    %353 = vmatprep.subr.bf16.mxu0 0
    %354 = vmatpush1.bf16.msra.mxu0 0
    %355 = vmatprep.subr.bf16.mxu0 0
    %356 = vmatpush1.bf16.msra.mxu0 0
    %357 = vmatprep.subr.bf16.mxu0 0
    %358 = vmatpush1.bf16.msra.mxu0 0
    %359 = vmatprep.subr.bf16.mxu0 0
    %360 = vmatpush1.bf16.msra.mxu0 0
    %361 = vmatprep.subr.bf16.mxu0 0
    %362 = vmatpush1.bf16.msra.mxu0 0
    %363 = vmatprep.subr.bf16.mxu0 0
    %364 = vmatpush1.bf16.msra.mxu0 0
    %365 = vmatprep.subr.bf16.mxu0 0
    %366 = vmatpush1.bf16.msra.mxu0 0
    %367 = vmatprep.subr.bf16.mxu0 0
    %368 = vmatpush1.bf16.msra.mxu0 0
    %369 = vmatprep.mubr.bf16.mxu0 0
    %370 = vmatmul.mubr.bf16.gmra.mrb[0].mxu0 %v288
    %v371 = vpop.f32.mrb[0].mxu0
    %v372 = vadd.f32 0.0, %v371
    %v373 = vpop.f32.mrb[0].mxu0
    %v374 = vpop.f32.mrb[0].mxu0
    %v375 = vpop.f32.mrb[0].mxu0
    %376 = vdwg.mxu0
    %v377 = vadd.f32 %v287, %v372
    %v378 = vtanh.pop %v377
    %v379 = vpack.c.bf16 %v378, %v378
    %380 = vst [vmem:[#allocation2] sm:$0xf] %v379
    %s381 = scalar_lea.vmem [#allocation2], 4
    %v382 = vld [vmem:[%s381] sm:$0xf]
    %v383 = vunpack.c.l.bf16 %v382
    %384 = vmatprep.subr.bf16.mxu0 0
    %385 = vmatpush1.bf16.msra.mxu0 %v321
    %386 = vmatprep.subr.bf16.mxu0 0
    %387 = vmatpush1.bf16.msra.mxu0 %v322
    %388 = vmatprep.subr.bf16.mxu0 0
    %389 = vmatpush1.bf16.msra.mxu0 %v323
    %390 = vmatprep.subr.bf16.mxu0 0
    %391 = vmatpush1.bf16.msra.mxu0 %v324
    %392 = vmatprep.subr.bf16.mxu0 0
    %393 = vmatpush1.bf16.msra.mxu0 %v325
    %394 = vmatprep.subr.bf16.mxu0 0
    %395 = vmatpush1.bf16.msra.mxu0 %v326
    %396 = vmatprep.subr.bf16.mxu0 0
    %397 = vmatpush1.bf16.msra.mxu0 %v327
    %398 = vmatprep.subr.bf16.mxu0 0
    %399 = vmatpush1.bf16.msra.mxu0 %v328
    %400 = vmatprep.subr.bf16.mxu0 0
    %401 = vmatpush1.bf16.msra.mxu0 0
    %402 = vmatprep.subr.bf16.mxu0 0
    %403 = vmatpush1.bf16.msra.mxu0 0
    %404 = vmatprep.subr.bf16.mxu0 0
    %405 = vmatpush1.bf16.msra.mxu0 0
    %406 = vmatprep.subr.bf16.mxu0 0
    %407 = vmatpush1.bf16.msra.mxu0 0
    %408 = vmatprep.subr.bf16.mxu0 0
    %409 = vmatpush1.bf16.msra.mxu0 0
    %410 = vmatprep.subr.bf16.mxu0 0
    %411 = vmatpush1.bf16.msra.mxu0 0
    %412 = vmatprep.subr.bf16.mxu0 0
    %413 = vmatpush1.bf16.msra.mxu0 0
    %414 = vmatprep.subr.bf16.mxu0 0
    %415 = vmatpush1.bf16.msra.mxu0 0
    %416 = vmatprep.mubr.bf16.mxu0 0
    %417 = vmatmul.mubr.bf16.gmra.mrb[0].mxu0 %v379
    %v418 = vpop.f32.mrb[0].mxu0
    %v419 = vadd.f32 0.0, %v418
    %v420 = vpop.f32.mrb[0].mxu0
    %v421 = vpop.f32.mrb[0].mxu0
    %v422 = vpop.f32.mrb[0].mxu0
    %423 = vdwg.mxu0
    %v424 = vadd.f32 %v383, %v419
    %v425 = vtanh.pop %v424
    %v426 = vpack.c.bf16 %v425, %v425
    %427 = vst [vmem:[%s381] sm:$0xf] %v426
    %s428 = scalar_lea.vmem [#allocation2], 8
    %v429 = vld [vmem:[%s428] sm:$0xf]
    %v430 = vunpack.c.l.bf16 %v429
    %431 = vmatprep.subr.bf16.mxu0 0
    %432 = vmatpush1.bf16.msra.mxu0 %v321
    %433 = vmatprep.subr.bf16.mxu0 0
    %434 = vmatpush1.bf16.msra.mxu0 %v322
    %435 = vmatprep.subr.bf16.mxu0 0
    %436 = vmatpush1.bf16.msra.mxu0 %v323
    %437 = vmatprep.subr.bf16.mxu0 0
    %438 = vmatpush1.bf16.msra.mxu0 %v324
    %439 = vmatprep.subr.bf16.mxu0 0
    %440 = vmatpush1.bf16.msra.mxu0 %v325
    %441 = vmatprep.subr.bf16.mxu0 0
    %442 = vmatpush1.bf16.msra.mxu0 %v326
    %443 = vmatprep.subr.bf16.mxu0 0
    %444 = vmatpush1.bf16.msra.mxu0 %v327
    %445 = vmatprep.subr.bf16.mxu0 0
    %446 = vmatpush1.bf16.msra.mxu0 %v328
    %447 = vmatprep.subr.bf16.mxu0 0
    %448 = vmatpush1.bf16.msra.mxu0 0
    %449 = vmatprep.subr.bf16.mxu0 0
    %450 = vmatpush1.bf16.msra.mxu0 0
    %451 = vmatprep.subr.bf16.mxu0 0
    %452 = vmatpush1.bf16.msra.mxu0 0
    %453 = vmatprep.subr.bf16.mxu0 0
    %454 = vmatpush1.bf16.msra.mxu0 0
    %455 = vmatprep.subr.bf16.mxu0 0
    %456 = vmatpush1.bf16.msra.mxu0 0
    %457 = vmatprep.subr.bf16.mxu0 0
    %458 = vmatpush1.bf16.msra.mxu0 0
    %459 = vmatprep.subr.bf16.mxu0 0
    %460 = vmatpush1.bf16.msra.mxu0 0
    %461 = vmatprep.subr.bf16.mxu0 0
    %462 = vmatpush1.bf16.msra.mxu0 0
    %463 = vmatprep.mubr.bf16.mxu0 0
    %464 = vmatmul.mubr.bf16.gmra.mrb[0].mxu0 %v426
    %v465 = vpop.f32.mrb[0].mxu0
    %v466 = vadd.f32 0.0, %v465
    %v467 = vpop.f32.mrb[0].mxu0
    %v468 = vpop.f32.mrb[0].mxu0
    %v469 = vpop.f32.mrb[0].mxu0
    %470 = vdwg.mxu0
    %v471 = vadd.f32 %v430, %v466
    %v472 = vtanh.pop %v471
    %v473 = vpack.c.bf16 %v472, %v472
    %474 = vst [vmem:[%s428] sm:$0xf] %v473
    %s475 = scalar_lea.vmem [#allocation2], 12
    %v476 = vld [vmem:[%s475] sm:$0xf]
    %v477 = vunpack.c.l.bf16 %v476
    %478 = vmatprep.subr.bf16.mxu0 0
    %479 = vmatpush1.bf16.msra.mxu0 %v321
    %480 = vmatprep.subr.bf16.mxu0 0
    %481 = vmatpush1.bf16.msra.mxu0 %v322
    %482 = vmatprep.subr.bf16.mxu0 0
    %483 = vmatpush1.bf16.msra.mxu0 %v323
    %484 = vmatprep.subr.bf16.mxu0 0
    %485 = vmatpush1.bf16.msra.mxu0 %v324
    %486 = vmatprep.subr.bf16.mxu0 0
    %487 = vmatpush1.bf16.msra.mxu0 %v325
    %488 = vmatprep.subr.bf16.mxu0 0
    %489 = vmatpush1.bf16.msra.mxu0 %v326
    %490 = vmatprep.subr.bf16.mxu0 0
    %491 = vmatpush1.bf16.msra.mxu0 %v327
    %492 = vmatprep.subr.bf16.mxu0 0
    %493 = vmatpush1.bf16.msra.mxu0 %v328
    %494 = vmatprep.subr.bf16.mxu0 0
    %495 = vmatpush1.bf16.msra.mxu0 0
    %496 = vmatprep.subr.bf16.mxu0 0
    %497 = vmatpush1.bf16.msra.mxu0 0
    %498 = vmatprep.subr.bf16.mxu0 0
    %499 = vmatpush1.bf16.msra.mxu0 0
    %500 = vmatprep.subr.bf16.mxu0 0
    %501 = vmatpush1.bf16.msra.mxu0 0
    %502 = vmatprep.subr.bf16.mxu0 0
    %503 = vmatpush1.bf16.msra.mxu0 0
    %504 = vmatprep.subr.bf16.mxu0 0
    %505 = vmatpush1.bf16.msra.mxu0 0
    %506 = vmatprep.subr.bf16.mxu0 0
    %507 = vmatpush1.bf16.msra.mxu0 0
    %508 = vmatprep.subr.bf16.mxu0 0
    %509 = vmatpush1.bf16.msra.mxu0 0
    %510 = vmatprep.mubr.bf16.mxu0 0
    %511 = vmatmul.mubr.bf16.gmra.mrb[0].mxu0 %v473
    %v512 = vpop.f32.mrb[0].mxu0
    %v513 = vadd.f32 0.0, %v512
    %v514 = vpop.f32.mrb[0].mxu0
    %v515 = vpop.f32.mrb[0].mxu0
    %v516 = vpop.f32.mrb[0].mxu0
    %517 = vdwg.mxu0
    %v518 = vadd.f32 %v477, %v513
    %v519 = vtanh.pop %v518
    %v520 = vpack.c.bf16 %v519, %v519
    %521 = vst [vmem:[%s475] sm:$0xf] %v520
    %s522 = scalar_lea.vmem [#allocation2], 16
    %v523 = vld [vmem:[%s522] sm:$0xf]
    %v524 = vunpack.c.l.bf16 %v523
    %525 = vmatprep.subr.bf16.mxu0 0
    %526 = vmatpush1.bf16.msra.mxu0 %v321
    %527 = vmatprep.subr.bf16.mxu0 0
    %528 = vmatpush1.bf16.msra.mxu0 %v322
    %529 = vmatprep.subr.bf16.mxu0 0
    %530 = vmatpush1.bf16.msra.mxu0 %v323
    %531 = vmatprep.subr.bf16.mxu0 0
    %532 = vmatpush1.bf16.msra.mxu0 %v324
    %533 = vmatprep.subr.bf16.mxu0 0
    %534 = vmatpush1.bf16.msra.mxu0 %v325
    %535 = vmatprep.subr.bf16.mxu0 0
    %536 = vmatpush1.bf16.msra.mxu0 %v326
    %537 = vmatprep.subr.bf16.mxu0 0
    %538 = vmatpush1.bf16.msra.mxu0 %v327
    %539 = vmatprep.subr.bf16.mxu0 0
    %540 = vmatpush1.bf16.msra.mxu0 %v328
    %541 = vmatprep.subr.bf16.mxu0 0
    %542 = vmatpush1.bf16.msra.mxu0 0
    %543 = vmatprep.subr.bf16.mxu0 0
    %544 = vmatpush1.bf16.msra.mxu0 0
    %545 = vmatprep.subr.bf16.mxu0 0
    %546 = vmatpush1.bf16.msra.mxu0 0
    %547 = vmatprep.subr.bf16.mxu0 0
    %548 = vmatpush1.bf16.msra.mxu0 0
    %549 = vmatprep.subr.bf16.mxu0 0
    %550 = vmatpush1.bf16.msra.mxu0 0
    %551 = vmatprep.subr.bf16.mxu0 0
    %552 = vmatpush1.bf16.msra.mxu0 0
    %553 = vmatprep.subr.bf16.mxu0 0
    %554 = vmatpush1.bf16.msra.mxu0 0
    %555 = vmatprep.subr.bf16.mxu0 0
    %556 = vmatpush1.bf16.msra.mxu0 0
    %557 = vmatprep.mubr.bf16.mxu0 0
    %558 = vmatmul.mubr.bf16.gmra.mrb[0].mxu0 %v520
    %v559 = vpop.f32.mrb[0].mxu0
    %v560 = vadd.f32 0.0, %v559
    %v561 = vpop.f32.mrb[0].mxu0
    %v562 = vpop.f32.mrb[0].mxu0
    %v563 = vpop.f32.mrb[0].mxu0
    %564 = vdwg.mxu0
    %v565 = vadd.f32 %v524, %v560
    %v566 = vtanh.pop %v565
    %v567 = vpack.c.bf16 %v566, %v566
    %568 = vst [vmem:[%s522] sm:$0xf] %v567
    %s569 = scalar_lea.vmem [#allocation2], 20
    %v570 = vld [vmem:[%s569] sm:$0xf]
    %v571 = vunpack.c.l.bf16 %v570
    %572 = vmatprep.subr.bf16.mxu0 0
    %573 = vmatpush1.bf16.msra.mxu0 %v321
    %574 = vmatprep.subr.bf16.mxu0 0
    %575 = vmatpush1.bf16.msra.mxu0 %v322
    %576 = vmatprep.subr.bf16.mxu0 0
    %577 = vmatpush1.bf16.msra.mxu0 %v323
    %578 = vmatprep.subr.bf16.mxu0 0
    %579 = vmatpush1.bf16.msra.mxu0 %v324
    %580 = vmatprep.subr.bf16.mxu0 0
    %581 = vmatpush1.bf16.msra.mxu0 %v325
    %582 = vmatprep.subr.bf16.mxu0 0
    %583 = vmatpush1.bf16.msra.mxu0 %v326
    %584 = vmatprep.subr.bf16.mxu0 0
    %585 = vmatpush1.bf16.msra.mxu0 %v327
    %586 = vmatprep.subr.bf16.mxu0 0
    %587 = vmatpush1.bf16.msra.mxu0 %v328
    %588 = vmatprep.subr.bf16.mxu0 0
    %589 = vmatpush1.bf16.msra.mxu0 0
    %590 = vmatprep.subr.bf16.mxu0 0
    %591 = vmatpush1.bf16.msra.mxu0 0
    %592 = vmatprep.subr.bf16.mxu0 0
    %593 = vmatpush1.bf16.msra.mxu0 0
    %594 = vmatprep.subr.bf16.mxu0 0
    %595 = vmatpush1.bf16.msra.mxu0 0
    %596 = vmatprep.subr.bf16.mxu0 0
    %597 = vmatpush1.bf16.msra.mxu0 0
    %598 = vmatprep.subr.bf16.mxu0 0
    %599 = vmatpush1.bf16.msra.mxu0 0
    %600 = vmatprep.subr.bf16.mxu0 0
    %601 = vmatpush1.bf16.msra.mxu0 0
    %602 = vmatprep.subr.bf16.mxu0 0
    %603 = vmatpush1.bf16.msra.mxu0 0
    %604 = vmatprep.mubr.bf16.mxu0 0
    %605 = vmatmul.mubr.bf16.gmra.mrb[0].mxu0 %v567
    %v606 = vpop.f32.mrb[0].mxu0
    %v607 = vadd.f32 0.0, %v606
    %v608 = vpop.f32.mrb[0].mxu0
    %v609 = vpop.f32.mrb[0].mxu0
    %v610 = vpop.f32.mrb[0].mxu0
    %611 = vdwg.mxu0
    %v612 = vadd.f32 %v571, %v607
    %v613 = vtanh.pop %v612
    %v614 = vpack.c.bf16 %v613, %v613
    %615 = vst [vmem:[%s569] sm:$0xf] %v614
    %s616 = scalar_lea.vmem [#allocation2], 24
    %v617 = vld [vmem:[%s616] sm:$0xf]
    %v618 = vunpack.c.l.bf16 %v617
    %619 = vmatprep.subr.bf16.mxu0 0
    %620 = vmatpush1.bf16.msra.mxu0 %v321
    %621 = vmatprep.subr.bf16.mxu0 0
    %622 = vmatpush1.bf16.msra.mxu0 %v322
    %623 = vmatprep.subr.bf16.mxu0 0
    %624 = vmatpush1.bf16.msra.mxu0 %v323
    %625 = vmatprep.subr.bf16.mxu0 0
    %626 = vmatpush1.bf16.msra.mxu0 %v324
    %627 = vmatprep.subr.bf16.mxu0 0
    %628 = vmatpush1.bf16.msra.mxu0 %v325
    %629 = vmatprep.subr.bf16.mxu0 0
    %630 = vmatpush1.bf16.msra.mxu0 %v326
    %631 = vmatprep.subr.bf16.mxu0 0
    %632 = vmatpush1.bf16.msra.mxu0 %v327
    %633 = vmatprep.subr.bf16.mxu0 0
    %634 = vmatpush1.bf16.msra.mxu0 %v328
    %635 = vmatprep.subr.bf16.mxu0 0
    %636 = vmatpush1.bf16.msra.mxu0 0
    %637 = vmatprep.subr.bf16.mxu0 0
    %638 = vmatpush1.bf16.msra.mxu0 0
    %639 = vmatprep.subr.bf16.mxu0 0
    %640 = vmatpush1.bf16.msra.mxu0 0
    %641 = vmatprep.subr.bf16.mxu0 0
    %642 = vmatpush1.bf16.msra.mxu0 0
    %643 = vmatprep.subr.bf16.mxu0 0
    %644 = vmatpush1.bf16.msra.mxu0 0
    %645 = vmatprep.subr.bf16.mxu0 0
    %646 = vmatpush1.bf16.msra.mxu0 0
    %647 = vmatprep.subr.bf16.mxu0 0
    %648 = vmatpush1.bf16.msra.mxu0 0
    %649 = vmatprep.subr.bf16.mxu0 0
    %650 = vmatpush1.bf16.msra.mxu0 0
    %651 = vmatprep.mubr.bf16.mxu0 0
    %652 = vmatmul.mubr.bf16.gmra.mrb[0].mxu0 %v614
    %v653 = vpop.f32.mrb[0].mxu0
    %v654 = vadd.f32 0.0, %v653
    %v655 = vpop.f32.mrb[0].mxu0
    %v656 = vpop.f32.mrb[0].mxu0
    %v657 = vpop.f32.mrb[0].mxu0
    %658 = vdwg.mxu0
    %v659 = vadd.f32 %v618, %v654
    %v660 = vtanh.pop %v659
    %v661 = vpack.c.bf16 %v660, %v660
    %662 = vst [vmem:[%s616] sm:$0xf] %v661
    %s663 = scalar_lea.vmem [#allocation2], 28
    %v664 = vld [vmem:[%s663] sm:$0xf]
    %v665 = vunpack.c.l.bf16 %v664
    %666 = vmatprep.subr.bf16.mxu0 0
    %667 = vmatpush1.bf16.msra.mxu0 %v321
    %668 = vmatprep.subr.bf16.mxu0 0
    %669 = vmatpush1.bf16.msra.mxu0 %v322
    %670 = vmatprep.subr.bf16.mxu0 0
    %671 = vmatpush1.bf16.msra.mxu0 %v323
    %672 = vmatprep.subr.bf16.mxu0 0
    %673 = vmatpush1.bf16.msra.mxu0 %v324
    %674 = vmatprep.subr.bf16.mxu0 0
    %675 = vmatpush1.bf16.msra.mxu0 %v325
    %676 = vmatprep.subr.bf16.mxu0 0
    %677 = vmatpush1.bf16.msra.mxu0 %v326
    %678 = vmatprep.subr.bf16.mxu0 0
    %679 = vmatpush1.bf16.msra.mxu0 %v327
    %680 = vmatprep.subr.bf16.mxu0 0
    %681 = vmatpush1.bf16.msra.mxu0 %v328
    %682 = vmatprep.subr.bf16.mxu0 0
    %683 = vmatpush1.bf16.msra.mxu0 0
    %684 = vmatprep.subr.bf16.mxu0 0
    %685 = vmatpush1.bf16.msra.mxu0 0
    %686 = vmatprep.subr.bf16.mxu0 0
    %687 = vmatpush1.bf16.msra.mxu0 0
    %688 = vmatprep.subr.bf16.mxu0 0
    %689 = vmatpush1.bf16.msra.mxu0 0
    %690 = vmatprep.subr.bf16.mxu0 0
    %691 = vmatpush1.bf16.msra.mxu0 0
    %692 = vmatprep.subr.bf16.mxu0 0
    %693 = vmatpush1.bf16.msra.mxu0 0
    %694 = vmatprep.subr.bf16.mxu0 0
    %695 = vmatpush1.bf16.msra.mxu0 0
    %696 = vmatprep.subr.bf16.mxu0 0
    %697 = vmatpush1.bf16.msra.mxu0 0
    %698 = vmatprep.mubr.bf16.mxu0 0
    %699 = vmatmul.mubr.bf16.gmra.mrb[0].mxu0 %v661
    %v700 = vpop.f32.mrb[0].mxu0
    %v701 = vadd.f32 0.0, %v700
    %v702 = vpop.f32.mrb[0].mxu0
    %v703 = vpop.f32.mrb[0].mxu0
    %v704 = vpop.f32.mrb[0].mxu0
    %705 = vdwg.mxu0
    %v706 = vadd.f32 %v665, %v701
    %v707 = vtanh.pop %v706
    %v708 = vpack.c.bf16 %v707, %v707
    %709 = vst [vmem:[%s663] sm:$0xf] %v708
    %710 = vst [vmem:[#allocation3] sm:$0xff] %v707
    %v711 = vld [vmem:[#allocation2] sm:$0xf]
    %v712 = vld [vmem:[#allocation2 + $0x4] sm:$0xf]
    %v713 = vld [vmem:[#allocation2 + $0x8] sm:$0xf]
    %v714 = vld [vmem:[#allocation2 + $0xc] sm:$0xf]
    %v715 = vld [vmem:[#allocation2 + $0x10] sm:$0xf]
    %v716 = vld [vmem:[#allocation2 + $0x14] sm:$0xf]
    %v717 = vld [vmem:[#allocation2 + $0x18] sm:$0xf]
    %v718 = vld [vmem:[#allocation2 + $0x1c] sm:$0xf]
    %v719 = vld [vmem:[#allocation10] sm:$0xf]
    %v720 = vld [vmem:[#allocation10 + $0x4] sm:$0xf]
    %v721 = vld [vmem:[#allocation10 + $0x8] sm:$0xf]
    %v722 = vld [vmem:[#allocation10 + $0xc] sm:$0xf]
    %v723 = vld [vmem:[#allocation10 + $0x10] sm:$0xf]
    %v724 = vld [vmem:[#allocation10 + $0x14] sm:$0xf]
    %v725 = vld [vmem:[#allocation10 + $0x18] sm:$0xf]
    %v726 = vld [vmem:[#allocation10 + $0x1c] sm:$0xf]
    %v727 = vld [vmem:[#allocation10 + $0x20] sm:$0xf]
    %v728 = vld [vmem:[#allocation10 + $0x24] sm:$0xf]
    %v729 = vld [vmem:[#allocation10 + $0x28] sm:$0xf]
    %v730 = vld [vmem:[#allocation10 + $0x2c] sm:$0xf]
    %v731 = vld [vmem:[#allocation10 + $0x30] sm:$0xf]
    %v732 = vld [vmem:[#allocation10 + $0x34] sm:$0xf]
    %v733 = vld [vmem:[#allocation10 + $0x38] sm:$0xf]
    %v734 = vld [vmem:[#allocation10 + $0x3c] sm:$0xf]
    %v735 = vld [vmem:[%s5] sm:$0x1]
    %v737 = vlaneseq
    %v738 = vshrl.u32 %v737, 7
    %v739 = vsub.s32 0, %v738
    %v740 = vrot.slane %v735, %v739
    %v750 = vunpack.c.l.b16 %v711
    %v751 = vunpack.c.l.b16 %v712
    %v752 = vunpack.c.l.b16 %v713
    %v753 = vunpack.c.l.b16 %v714
    %v754 = vunpack.c.l.b16 %v715
    %v755 = vunpack.c.l.b16 %v716
    %v756 = vunpack.c.l.b16 %v717
    %v757 = vunpack.c.l.b16 %v718
    %v758 = vpack.c.b16 %v751, %v750
    %v759 = vpack.c.b16 %v753, %v752
    %v760 = vpack.c.b16 %v755, %v754
    %v761 = vpack.c.b16 %v757, %v756
    %v782 = vunpack.c.l.b16 %v719
    %v783 = vunpack.c.l.b16 %v720
    %v784 = vunpack.c.l.b16 %v721
    %v785 = vunpack.c.l.b16 %v722
    %v786 = vunpack.c.l.b16 %v723
    %v787 = vunpack.c.l.b16 %v724
    %v788 = vunpack.c.l.b16 %v725
    %v789 = vunpack.c.l.b16 %v726
    %v790 = vunpack.c.l.b16 %v727
    %v791 = vunpack.c.l.b16 %v728
    %v792 = vunpack.c.l.b16 %v729
    %v793 = vunpack.c.l.b16 %v730
    %v794 = vunpack.c.l.b16 %v731
    %v795 = vunpack.c.l.b16 %v732
    %v796 = vunpack.c.l.b16 %v733
    %v797 = vunpack.c.l.b16 %v734
    %v798 = vpack.c.b16 %v783, %v782
    %v799 = vpack.c.b16 %v785, %v784
    %v800 = vpack.c.b16 %v787, %v786
    %v801 = vpack.c.b16 %v789, %v788
    %v802 = vpack.c.b16 %v791, %v790
    %v803 = vpack.c.b16 %v793, %v792
    %v804 = vpack.c.b16 %v795, %v794
    %v805 = vpack.c.b16 %v797, %v796
    %814 = vmatprep.subr.bf16.mxu0 0
    %815 = vmatpush1.bf16.msra.mxu0 %v798
    %816 = vmatprep.subr.bf16.mxu0 0
    %817 = vmatpush1.bf16.msra.mxu0 %v799
    %818 = vmatprep.subr.bf16.mxu0 0
    %819 = vmatpush1.bf16.msra.mxu0 %v800
    %820 = vmatprep.subr.bf16.mxu0 0
    %821 = vmatpush1.bf16.msra.mxu0 %v801
    %822 = vmatprep.subr.bf16.mxu0 0
    %823 = vmatpush1.bf16.msra.mxu0 %v802
    %824 = vmatprep.subr.bf16.mxu0 0
    %825 = vmatpush1.bf16.msra.mxu0 %v803
    %826 = vmatprep.subr.bf16.mxu0 0
    %827 = vmatpush1.bf16.msra.mxu0 %v804
    %828 = vmatprep.subr.bf16.mxu0 0
    %829 = vmatpush1.bf16.msra.mxu0 %v805
    %830 = vmatprep.subr.bf16.mxu0 0
    %831 = vmatpush1.bf16.msra.mxu0 0
    %832 = vmatprep.subr.bf16.mxu0 0
    %833 = vmatpush1.bf16.msra.mxu0 0
    %834 = vmatprep.subr.bf16.mxu0 0
    %835 = vmatpush1.bf16.msra.mxu0 0
    %836 = vmatprep.subr.bf16.mxu0 0
    %837 = vmatpush1.bf16.msra.mxu0 0
    %838 = vmatprep.subr.bf16.mxu0 0
    %839 = vmatpush1.bf16.msra.mxu0 0
    %840 = vmatprep.subr.bf16.mxu0 0
    %841 = vmatpush1.bf16.msra.mxu0 0
    %842 = vmatprep.subr.bf16.mxu0 0
    %843 = vmatpush1.bf16.msra.mxu0 0
    %844 = vmatprep.subr.bf16.mxu0 0
    %845 = vmatpush1.bf16.msra.mxu0 0
    %846 = vmatprep.mubr.bf16.mxu0 0
    %847 = vmatmul.mubr.bf16.gmra.mrb[0].mxu0 %v758
    %v848 = vpop.f32.mrb[0].mxu0
    %v849 = vadd.f32 %v740, %v848
    %v850 = vpop.f32.mrb[0].mxu0
    %v851 = vpop.f32.mrb[0].mxu0
    %v852 = vadd.f32 %v740, %v851
    %v853 = vpop.f32.mrb[0].mxu0
    %854 = vmatprep.mubr.bf16.mxu0 0
    %855 = vmatmul.mubr.bf16.gmra.mrb[0].mxu0 %v759
    %v856 = vpop.f32.mrb[0].mxu0
    %v857 = vadd.f32 %v740, %v856
    %v858 = vpop.f32.mrb[0].mxu0
    %v859 = vpop.f32.mrb[0].mxu0
    %v860 = vadd.f32 %v740, %v859
    %v861 = vpop.f32.mrb[0].mxu0
    %862 = vmatprep.mubr.bf16.mxu0 0
    %863 = vmatmul.mubr.bf16.gmra.mrb[0].mxu0 %v760
    %v864 = vpop.f32.mrb[0].mxu0
    %v865 = vadd.f32 %v740, %v864
    %v866 = vpop.f32.mrb[0].mxu0
    %v867 = vpop.f32.mrb[0].mxu0
    %v868 = vadd.f32 %v740, %v867
    %v869 = vpop.f32.mrb[0].mxu0
    %870 = vmatprep.mubr.bf16.mxu0 0
    %871 = vmatmul.mubr.bf16.gmra.mrb[0].mxu0 %v761
    %v872 = vpop.f32.mrb[0].mxu0
    %v873 = vadd.f32 %v740, %v872
    %v874 = vpop.f32.mrb[0].mxu0
    %v875 = vpop.f32.mrb[0].mxu0
    %v876 = vadd.f32 %v740, %v875
    %v877 = vpop.f32.mrb[0].mxu0
    %878 = vdwg.mxu0
    %v879 = vpack.c.bf16 %v849, %v849
    %v880 = vpack.c.bf16 %v852, %v852
    %v881 = vpack.c.bf16 %v857, %v857
    %v882 = vpack.c.bf16 %v860, %v860
    %v883 = vpack.c.bf16 %v865, %v865
    %v884 = vpack.c.bf16 %v868, %v868
    %v885 = vpack.c.bf16 %v873, %v873
    %v886 = vpack.c.bf16 %v876, %v876
    %887 = vst [vmem:[#allocation12] sm:$0xf] %v879
    %888 = vst [vmem:[#allocation12 + $0x4] sm:$0xf] %v880
    %889 = vst [vmem:[#allocation12 + $0x8] sm:$0xf] %v881
    %890 = vst [vmem:[#allocation12 + $0xc] sm:$0xf] %v882
    %891 = vst [vmem:[#allocation12 + $0x10] sm:$0xf] %v883
    %892 = vst [vmem:[#allocation12 + $0x14] sm:$0xf] %v884
    %893 = vst [vmem:[#allocation12 + $0x18] sm:$0xf] %v885
    %894 = vst [vmem:[#allocation12 + $0x1c] sm:$0xf] %v886
    // Predicated region
    $region46: #{tpu_custom_call.1} parent=1 // pred_check
      _
    $region47: #{tpu_custom_call.1} parent=1 // pred_check_branch
      %896 = sbr.rel (0) target = $region49
    $region48: #{tpu_custom_call.1} parent=1 // pred_region
      %s898 = ssub.s32 512, 512
      %899 = vsyncadd [#allocation6], %s898
      %s900 = sshll.u32 [#allocation12], 4
      %s901 = int_to_ptr.vmem [resolvable:$true] %s900
      %906 = dma.vmem_to_hbm [thread:$0]  %s901, 512, %s6, [#allocation6], 64, 64, 4
    $region49: #{tpu_custom_call.1} parent=1 // pred_fallthru
      _
    // Predicated region
    $region50: #{tpu_custom_call.1} parent=1 // pred_check
      _
    $region51: #{tpu_custom_call.1} parent=1 // pred_check_branch
      %908 = sbr.rel (0) target = $region53
    $region52: #{tpu_custom_call.1} parent=1 // pred_region
      %909 = dma.done [#allocation6], 512
    $region53: #{tpu_custom_call.1} parent=1 // pred_fallthru
      _
    %910 = vsyncpa [#allocation5], 1
    %911 = vsyncpa [#allocation8], 1
    %912 = vsyncpa [#allocation11], 1
    %913 = vsyncpa [#allocation6], 1

</llo_original>
